<compile_context>
chip_gen: v7x
topology: tpu7x:2x2x1
jax: 0.10.0
libtpu: 0.0.40
codegen_flags: <defaults>
</compile_context>

<pallas_src>
import jax
import jax.numpy as jnp
from jax.experimental import pallas as pl
from jax.experimental.pallas import tpu as pltpu

REVIN_EPS = 1e-5  # RevIN eps (denorm uses eps*eps on the affine weight)


def _round_up(n, m):
    return ((n + m - 1) // m) * m


def fbm_l_kernel(x_ref, w_ref, b_ref, gw_ref, gb_ref, o_ref):
    """One row tile (TM flattened (batch, channel) rows) per grid step.

    x_ref : [TM, L]  input rows (time on lanes)
    w_ref : [L, T]   Linear weight, pre-transposed in the wrapper
    b_ref : [1, T]   Linear bias
    gw_ref: [TM, 1]  per-row RevIN affine weight
    gb_ref: [TM, 1]  per-row RevIN affine bias
    o_ref : [TM, T]  output rows
    """
    x = x_ref[...]                                   # [TM, L]
    gw = gw_ref[...]                                 # [TM, 1]
    gb = gb_ref[...]                                 # [TM, 1]

    # ---- RevIN 'norm' (stats over time, unbiased=False), fused scale/shift --
    mean = jnp.mean(x, axis=-1, keepdims=True)       # [TM, 1]
    xc = x - mean
    var = jnp.mean(xc * xc, axis=-1, keepdims=True)  # [TM, 1]
    inv_std = jax.lax.rsqrt(var + REVIN_EPS)         # EUP
    z = xc * (gw * inv_std) + gb                     # [TM, L], one FMA

    # ---- Linear head: context_window -> target_window (shared) ------------
    # Weight already [L, T]; no in-kernel transpose.  (Cast operands to bf16
    # here if ~1e-3 error is acceptable for more MXU throughput.)
    y = jnp.dot(z, w_ref[...], preferred_element_type=jnp.float32)  # [TM, T]
    y = y + b_ref[...]
    # head_dropout: identity in eval mode.

    # ---- RevIN 'denorm', fused scale/shift ---------------------------------
    std = jnp.sqrt(var + REVIN_EPS)                              # [TM, 1]
    scale_d = std * pl.reciprocal(gw + REVIN_EPS * REVIN_EPS,
                                  approx=False)                  # [TM, 1]
    shift_d = mean - gb * scale_d                                # [TM, 1]
    o_ref[...] = (y * scale_d + shift_d).astype(o_ref.dtype)


def fbm_l_forward(x_blc, weight, bias, aff_w, aff_b, *, tm=256):
    """x_blc: [B, L, C] float32 -> [B, T, C] float32."""
    B, L, C = x_blc.shape
    T = weight.shape[0]
    R = B * C

    # ---- Layout plumbing (plain XLA) --------------------------------------
    # [B, L, C] -> [B, C, L] -> [B*C, L] rows; per-row affine params; W^T.
    x_rows = jnp.transpose(x_blc, (0, 2, 1)).reshape(R, L)
    gw_rows = jnp.tile(aff_w, (B,)).reshape(R, 1)
    gb_rows = jnp.tile(aff_b, (B,)).reshape(R, 1)
    w_lt = jnp.transpose(weight)                   # [L, T], done once
    b2 = bias.reshape(1, T)

    # Row tile: multiple of 8 sublanes, capped (VMEM-safe on v5e/v6e/v7x).
    TM = _round_up(min(tm, _round_up(R, 8)), 8)
    R_pad = _round_up(R, TM)
    if R_pad != R:
        pad = R_pad - R
        x_rows = jnp.pad(x_rows, ((0, pad), (0, 0)))
        gw_rows = jnp.pad(gw_rows, ((0, pad), (0, 0)), constant_values=1.0)
        gb_rows = jnp.pad(gb_rows, ((0, pad), (0, 0)))

    out_rows = pl.pallas_call(
        fbm_l_kernel,
        out_shape=jax.ShapeDtypeStruct((R_pad, T), jnp.float32),
        grid_spec=pltpu.PrefetchScalarGridSpec(
            num_scalar_prefetch=0,
            grid=(R_pad // TM,),
            in_specs=[
                pl.BlockSpec((TM, L), lambda i: (i, 0)),   # x rows
                pl.BlockSpec((L, T), lambda i: (0, 0)),    # W^T (loop-invariant)
                pl.BlockSpec((1, T), lambda i: (0, 0)),    # bias
                pl.BlockSpec((TM, 1), lambda i: (i, 0)),   # affine w per row
                pl.BlockSpec((TM, 1), lambda i: (i, 0)),   # affine b per row
            ],
            out_specs=pl.BlockSpec((TM, T), lambda i: (i, 0)),
        ),
        compiler_params=pltpu.CompilerParams(
            dimension_semantics=("parallel",),
        ),
    )(x_rows, w_lt, b2, gw_rows, gb_rows)

    # ---- Layout plumbing back to PyTorch output layout [B, T, C] ----------
    out_bct = out_rows[:R].reshape(B, C, T)
    return jnp.transpose(out_bct, (0, 2, 1))


def fbm_l_reference(x_blc, weight, bias, aff_w, aff_b):
    """Pure-JAX reference of the same forward (for correctness check)."""
    mean = jnp.mean(x_blc, axis=1, keepdims=True)                  # [B,1,C]
    var = jnp.mean((x_blc - mean) ** 2, axis=1, keepdims=True)
    std = jnp.sqrt(var + REVIN_EPS)
    z = (x_blc - mean) / std * aff_w + aff_b                       # [B,L,C]
    z = jnp.transpose(z, (0, 2, 1))                                # [B,C,L]
    y = jnp.einsum("bcl,tl->bct", z, weight) + bias                # [B,C,T]
    y = jnp.transpose(y, (0, 2, 1))                                # [B,T,C]
    y = (y - aff_b) / (aff_w + REVIN_EPS * REVIN_EPS) * std + mean
    return y


if __name__ == "__main__":
    # Small config: batch=2, enc_in(C)=4, seq_len(L)=16, pred_len(T)=8.
    B, L, C, T = 2, 16, 4, 8

    key = jax.random.PRNGKey(0)
    kx, kw, kb, kgw, kgb = jax.random.split(key, 5)

    x = jax.random.normal(kx, (B, L, C), dtype=jnp.float32)

    # nn.Linear(context_window, target_window) init: U(-1/sqrt(L), 1/sqrt(L))
    bound = 1.0 / (L ** 0.5)
    weight = jax.random.uniform(kw, (T, L), jnp.float32, -bound, bound)
    bias = jax.random.uniform(kb, (T,), jnp.float32, -bound, bound)

    # RevIN affine params (nominally ones/zeros; perturb to exercise the path)
    aff_w = 1.0 + 0.05 * jax.random.normal(kgw, (C,), dtype=jnp.float32)
    aff_b = 0.05 * jax.random.normal(kgb, (C,), dtype=jnp.float32)

    out = fbm_l_forward(x, weight, bias, aff_w, aff_b)
    out = jax.block_until_ready(out)

    ref = fbm_l_reference(x, weight, bias, aff_w, aff_b)
    assert out.shape == (B, T, C), out.shape
    assert jnp.allclose(out, ref, atol=2e-4, rtol=2e-4), (
        float(jnp.max(jnp.abs(out - ref)))
    )

    print("KERNEL_OK")
</pallas_src>

<mosaic_0001>
module attributes {stable_mosaic.version = 11 : i64} {
  func.func @fbm_l_kernel(%arg0: i32, %arg1: memref<8x16xf32, #tpu.memory_space<vmem>>, %arg2: memref<16x8xf32, #tpu.memory_space<vmem>>, %arg3: memref<1x8xf32, #tpu.memory_space<vmem>>, %arg4: memref<8x1xf32, #tpu.memory_space<vmem>>, %arg5: memref<8x1xf32, #tpu.memory_space<vmem>>, %arg6: memref<8x8xf32, #tpu.memory_space<vmem>>) attributes {dimension_semantics = [#tpu.dimension_semantics<parallel>], iteration_bounds = array<i64: 1>, scalar_prefetch = 0 : i64, scratch_operands = 0 : i64, tpu.core_type = #tpu.core_type<tc>, window_params = [{transform_indices = @transform_0, window_bounds = array<i64: 8, 16>}, {pipeline_mode = #tpu.pipeline_mode<synchronous>, transform_indices = @transform_1, window_bounds = array<i64: 16, 8>}, {pipeline_mode = #tpu.pipeline_mode<synchronous>, transform_indices = @transform_2, window_bounds = array<i64: 1, 8>}, {transform_indices = @transform_3, window_bounds = array<i64: 8, 1>}, {transform_indices = @transform_4, window_bounds = array<i64: 8, 1>}, {transform_indices = @transform_5, window_bounds = array<i64: 8, 8>}]} {
    %c0 = arith.constant 0 : index
    %c0_0 = arith.constant 0 : index
    %0 = vector.load %arg1[%c0, %c0_0] : memref<8x16xf32, #tpu.memory_space<vmem>>, vector<8x16xf32>
    %c0_1 = arith.constant 0 : index
    %c0_2 = arith.constant 0 : index
    %1 = vector.load %arg4[%c0_1, %c0_2] : memref<8x1xf32, #tpu.memory_space<vmem>>, vector<8x1xf32>
    %c0_3 = arith.constant 0 : index
    %c0_4 = arith.constant 0 : index
    %2 = vector.load %arg5[%c0_3, %c0_4] : memref<8x1xf32, #tpu.memory_space<vmem>>, vector<8x1xf32>
    %cst = arith.constant dense<0.000000e+00> : vector<8xf32>
    %3 = vector.multi_reduction <add>, %0, %cst [1] : vector<8x16xf32> to vector<8xf32>
    %4 = vector.shape_cast %3 : vector<8xf32> to vector<8x1xf32>
    %cst_5 = arith.constant 1.600000e+01 : f32
    %5 = vector.broadcast %cst_5 : f32 to vector<8x1xf32>
    %6 = arith.divf %4, %5 : vector<8x1xf32>
    %7 = vector.broadcast %6 : vector<8x1xf32> to vector<8x16xf32>
    %8 = arith.subf %0, %7 : vector<8x16xf32>
    %9 = arith.mulf %8, %8 : vector<8x16xf32>
    %cst_6 = arith.constant dense<0.000000e+00> : vector<8xf32>
    %10 = vector.multi_reduction <add>, %9, %cst_6 [1] : vector<8x16xf32> to vector<8xf32>
    %11 = vector.shape_cast %10 : vector<8xf32> to vector<8x1xf32>
    %cst_7 = arith.constant 1.600000e+01 : f32
    %12 = vector.broadcast %cst_7 : f32 to vector<8x1xf32>
    %13 = arith.divf %11, %12 : vector<8x1xf32>
    %cst_8 = arith.constant 9.99999974E-6 : f32
    %14 = vector.broadcast %cst_8 : f32 to vector<8x1xf32>
    %15 = arith.addf %13, %14 : vector<8x1xf32>
    %16 = math.rsqrt %15 : vector<8x1xf32>
    %17 = arith.mulf %1, %16 : vector<8x1xf32>
    %18 = vector.broadcast %17 : vector<8x1xf32> to vector<8x16xf32>
    %19 = arith.mulf %8, %18 : vector<8x16xf32>
    %20 = vector.broadcast %2 : vector<8x1xf32> to vector<8x16xf32>
    %21 = arith.addf %19, %20 : vector<8x16xf32>
    %c0_9 = arith.constant 0 : index
    %c0_10 = arith.constant 0 : index
    %22 = vector.load %arg2[%c0_9, %c0_10] : memref<16x8xf32, #tpu.memory_space<vmem>>, vector<16x8xf32>
    %cst_11 = arith.constant dense<0.000000e+00> : vector<8x8xf32>
    %23 = tpu.matmul %21, %22, %cst_11 {dimension_numbers = #tpu.dot_dimension_numbers<[1], [0], [0], [1], [0, 0, 1, 1], [], []>} : vector<8x16xf32>, vector<16x8xf32>, vector<8x8xf32> -> vector<8x8xf32>
    %c0_12 = arith.constant 0 : index
    %c0_13 = arith.constant 0 : index
    %24 = vector.load %arg3[%c0_12, %c0_13] : memref<1x8xf32, #tpu.memory_space<vmem>>, vector<1x8xf32>
    %25 = vector.broadcast %24 : vector<1x8xf32> to vector<8x8xf32>
    %26 = arith.addf %23, %25 : vector<8x8xf32>
    %cst_14 = arith.constant 9.99999974E-6 : f32
    %27 = vector.broadcast %cst_14 : f32 to vector<8x1xf32>
    %28 = arith.addf %13, %27 : vector<8x1xf32>
    %29 = math.sqrt %28 : vector<8x1xf32>
    %cst_15 = arith.constant 1.000000e-10 : f32
    %30 = vector.broadcast %cst_15 : f32 to vector<8x1xf32>
    %31 = arith.addf %1, %30 : vector<8x1xf32>
    %32 = tpu.reciprocal %31 : vector<8x1xf32> -> vector<8x1xf32>
    %33 = arith.mulf %29, %32 : vector<8x1xf32>
    %34 = arith.mulf %2, %33 : vector<8x1xf32>
    %35 = arith.subf %6, %34 : vector<8x1xf32>
    %36 = vector.broadcast %33 : vector<8x1xf32> to vector<8x8xf32>
    %37 = arith.mulf %26, %36 : vector<8x8xf32>
    %38 = vector.broadcast %35 : vector<8x1xf32> to vector<8x8xf32>
    %39 = arith.addf %37, %38 : vector<8x8xf32>
    %c0_16 = arith.constant 0 : index
    %c0_17 = arith.constant 0 : index
    %40 = vector.load %arg6[%c0_16, %c0_17] : memref<8x8xf32, #tpu.memory_space<vmem>>, vector<8x8xf32>
    tpu.vector_store %arg6[%c0_16, %c0_17], %39 {strides = array<i32>} : memref<8x8xf32, #tpu.memory_space<vmem>>, vector<8x8xf32>,
    return
  }
  func.func @transform_0(%arg0: i32) -> (i32, i32) {
    %c0_i32 = arith.constant 0 : i32
    %c0_i32_0 = arith.constant 0 : i32
    return %arg0, %c0_i32 : i32, i32
  }
  func.func @transform_1(%arg0: i32) -> (i32, i32) {
    %c0_i32 = arith.constant 0 : i32
    %c0_i32_0 = arith.constant 0 : i32
    %c0_i32_1 = arith.constant 0 : i32
    return %c0_i32, %c0_i32_0 : i32, i32
  }
  func.func @transform_2(%arg0: i32) -> (i32, i32) {
    %c0_i32 = arith.constant 0 : i32
    %c0_i32_0 = arith.constant 0 : i32
    %c0_i32_1 = arith.constant 0 : i32
    return %c0_i32, %c0_i32_0 : i32, i32
  }
  func.func @transform_3(%arg0: i32) -> (i32, i32) {
    %c0_i32 = arith.constant 0 : i32
    %c0_i32_0 = arith.constant 0 : i32
    return %arg0, %c0_i32 : i32, i32
  }
  func.func @transform_4(%arg0: i32) -> (i32, i32) {
    %c0_i32 = arith.constant 0 : i32
    %c0_i32_0 = arith.constant 0 : i32
    return %arg0, %c0_i32 : i32, i32
  }
  func.func @transform_5(%arg0: i32) -> (i32, i32) {
    %c0_i32 = arith.constant 0 : i32
    %c0_i32_0 = arith.constant 0 : i32
    return %arg0, %c0_i32 : i32, i32
  }
}

</mosaic_0001>

<llo_original>
// kernel: tpu_custom_call.1
$region0: #{tpu_custom_call.1}
  #allocation0 [shape = 'u32[]', space=smem, size = 0x4, offset = 0x4, fixed_abs, tag = 'smem constant byte address 0x4 - core index']
  #allocation1 [shape = 'u32[144,128]{1,0:T(1,128)}', space=vmem, size = 0x12000, scoped, tag = 'internal scratch']
  %s0 = inlined_call_operand.vmem [shape: f32[8,16], index: 0, kind: input, shape index: {}]
  %s1 = inlined_call_operand.vmem [shape: f32[16,8], index: 1, kind: input, shape index: {}]
  %s2 = inlined_call_operand.vmem [shape: f32[1,8], index: 2, kind: input, shape index: {}]
  %s3 = inlined_call_operand.vmem [shape: f32[8,1], index: 3, kind: input, shape index: {}]
  %s4 = inlined_call_operand.vmem [shape: f32[8,1], index: 4, kind: input, shape index: {}]
  %s5 = inlined_call_operand.hbm [shape: f32[8,8], index: 5, kind: output, shape index: {}]
  %s6 = sld [smem:[#allocation0]]
  $region30: #{tpu_custom_call.1} parent=0
    _
  %s8 = ssub.s32 1, %s6
  %s9 = scalar_select 0, %s8, %s6
  $region1: #{tpu_custom_call.1} parent=0
    #allocation2 [shape = 'u8[4096]{0}', space=vmem, size = 0x1000, scoped, tag = 'output window, operand 0, single buffered']
    #allocation3 [shape = 's32[1]{0}', space=sflag, size = 0x4, scoped, tag = 'scoped memory for tpu_custom_call.1']
    %10 = vsyncpa [#allocation3], 0
    // Predicated region
    $region2: #{tpu_custom_call.1} parent=1 // pred_check
      _
    $region3: #{tpu_custom_call.1} parent=1 // pred_check_branch
      %12 = sbr.rel (0) target = $region5
    $region4: #{tpu_custom_call.1} parent=1 // pred_region
      _
    $region5: #{tpu_custom_call.1} parent=1 // pred_fallthru
      _
    // Predicated region
    $region6: #{tpu_custom_call.1} parent=1 // pred_check
      _
    $region7: #{tpu_custom_call.1} parent=1 // pred_check_branch
      %14 = sbr.rel (0) target = $region9
    $region8: #{tpu_custom_call.1} parent=1 // pred_region
      _
    $region9: #{tpu_custom_call.1} parent=1 // pred_fallthru
      _
    // Predicated region
    $region10: #{tpu_custom_call.1} parent=1 // pred_check
      _
    $region11: #{tpu_custom_call.1} parent=1 // pred_check_branch
      %16 = sbr.rel (0) target = $region13
    $region12: #{tpu_custom_call.1} parent=1 // pred_region
      _
    $region13: #{tpu_custom_call.1} parent=1 // pred_fallthru
      _
    // Predicated region
    $region14: #{tpu_custom_call.1} parent=1 // pred_check
      _
    $region15: #{tpu_custom_call.1} parent=1 // pred_check_branch
      %18 = sbr.rel (0) target = $region17
    $region16: #{tpu_custom_call.1} parent=1 // pred_region
      _
    $region17: #{tpu_custom_call.1} parent=1 // pred_fallthru
      _
    // Predicated region
    $region18: #{tpu_custom_call.1} parent=1 // pred_check
      _
    $region19: #{tpu_custom_call.1} parent=1 // pred_check_branch
      %20 = sbr.rel (0) target = $region21
    $region20: #{tpu_custom_call.1} parent=1 // pred_region
      _
    $region21: #{tpu_custom_call.1} parent=1 // pred_fallthru
      _
    %v21 = vld [vmem:[%s0] sm:$0xff]
    %v22 = vld [vmem:[%s3] sm:$0xff]
    %v23 = vld [vmem:[%s4] sm:$0xff]
    %vm24 = vcmask 130048
    %v25 = vsel %vm24, %v21, 0.0
    %26 = vadd.xlane.f32.xlu0 %v25
    %v27 = vpop.xlane.xlu0 %26
    %v28 = vrcp.pop 16.0
    %v29 = vmul.f32 %v27, %v28
    %v30 = vsub.f32 %v21, %v29
    %v31 = vmul.f32 %v30, %v30
    %v32 = vsel %vm24, %v31, 0.0
    %33 = vadd.xlane.f32.xlu0 %v32
    %v34 = vpop.xlane.xlu0 %33
    %v35 = vmul.f32 %v34, %v28
    %v36 = vadd.f32 %v35, 1e-05
    %v37 = vrsqrt.pop %v36
    %v38 = vmul.f32 %v22, %v37
    %40 = vset.pattern.permute.xlu0 0
    %41 = vperm.xlu0 %40, %v38
    %v42 = vpop.permute.xlu0 %41
    %v44 = vmul.f32 %v30, %v42
    %46 = vset.pattern.permute.xlu0 0
    %47 = vperm.xlu0 %46, %v23
    %v48 = vpop.permute.xlu0 %47
    %v50 = vadd.f32 %v44, %v48
    %v51 = vld [vmem:[%s1] sm:$0xff]
    %v52 = vld [vmem:[%s1 + $0x8] sm:$0xff]
    %v53 = vld [vmem:[%s2] sm:$0x1]
    %v55 = vlaneseq
    %v56 = vshrl.u32 %v55, 7
    %v57 = vsub.s32 0, %v56
    %v58 = vrot.slane %v53, %v57
    %v61 = vsel %vm24, %v50, 0
    %63 = vmatprep.subr.mxu0 0.0
    %64 = vmatpush1.msra.mxu0 %v51
    %65 = vmatprep.subr.mxu0 0.0
    %66 = vmatpush1.msra.mxu0 %v52
    %67 = vmatprep.subr.mxu0 0.0
    %68 = vmatpush1.msra.mxu0 0.0
    %69 = vmatprep.subr.mxu0 0.0
    %70 = vmatpush1.msra.mxu0 0.0
    %71 = vmatprep.subr.mxu0 0.0
    %72 = vmatpush1.msra.mxu0 0.0
    %73 = vmatprep.subr.mxu0 0.0
    %74 = vmatpush1.msra.mxu0 0.0
    %75 = vmatprep.subr.mxu0 0.0
    %76 = vmatpush1.msra.mxu0 0.0
    %77 = vmatprep.subr.mxu0 0.0
    %78 = vmatpush1.msra.mxu0 0.0
    %79 = vmatprep.subr.mxu0 0.0
    %80 = vmatpush1.msra.mxu0 0.0
    %81 = vmatprep.subr.mxu0 0.0
    %82 = vmatpush1.msra.mxu0 0.0
    %83 = vmatprep.subr.mxu0 0.0
    %84 = vmatpush1.msra.mxu0 0.0
    %85 = vmatprep.subr.mxu0 0.0
    %86 = vmatpush1.msra.mxu0 0.0
    %87 = vmatprep.subr.mxu0 0.0
    %88 = vmatpush1.msra.mxu0 0.0
    %89 = vmatprep.subr.mxu0 0.0
    %90 = vmatpush1.msra.mxu0 0.0
    %91 = vmatprep.subr.mxu0 0.0
    %92 = vmatpush1.msra.mxu0 0.0
    %93 = vmatprep.subr.mxu0 0.0
    %94 = vmatpush1.msra.mxu0 0.0
    %95 = vmatprep.subr.mxu0 0.0
    %96 = vmatpush1.msra.mxu0 0.0
    %97 = vmatprep.subr.mxu0 0.0
    %98 = vmatpush1.msra.mxu0 0.0
    %99 = vmatprep.subr.mxu0 0.0
    %100 = vmatpush1.msra.mxu0 0.0
    %101 = vmatprep.subr.mxu0 0.0
    %102 = vmatpush1.msra.mxu0 0.0
    %103 = vmatprep.subr.mxu0 0.0
    %104 = vmatpush1.msra.mxu0 0.0
    %105 = vmatprep.subr.mxu0 0.0
    %106 = vmatpush1.msra.mxu0 0.0
    %107 = vmatprep.subr.mxu0 0.0
    %108 = vmatpush1.msra.mxu0 0.0
    %109 = vmatprep.subr.mxu0 0.0
    %110 = vmatpush1.msra.mxu0 0.0
    %111 = vmatprep.subr.mxu0 0.0
    %112 = vmatpush1.msra.mxu0 0.0
    %113 = vmatprep.subr.mxu0 0.0
    %114 = vmatpush1.msra.mxu0 0.0
    %115 = vmatprep.subr.mxu0 0.0
    %116 = vmatpush1.msra.mxu0 0.0
    %117 = vmatprep.subr.mxu0 0.0
    %118 = vmatpush1.msra.mxu0 0.0
    %119 = vmatprep.subr.mxu0 0.0
    %120 = vmatpush1.msra.mxu0 0.0
    %121 = vmatprep.subr.mxu0 0.0
    %122 = vmatpush1.msra.mxu0 0.0
    %123 = vmatprep.subr.mxu0 0.0
    %124 = vmatpush1.msra.mxu0 0.0
    %125 = vmatprep.subr.mxu0 0.0
    %126 = vmatpush1.msra.mxu0 0.0
    %127 = vmatprep.mubr.f32.mxu0 0.0
    %128 = vmatmul.mubr.f32.gmra.mrb[0].mxu0 %v61
    %v129 = vpop.f32.mrb[0].mxu0
    %v130 = vadd.f32 %v58, %v129
    %v131 = vpop.f32.mrb[0].mxu0
    %132 = vdwg.mxu0
    %v133 = vrsqrt.pop %v36
    %v134 = vmul.f32 %v36, %v133
    %vm135 = vcmp.eq.f32.partialorder %v36, inf
    %v136 = vsel %vm135, %v36, %v134
    %vm137 = vcmp.eq.f32.partialorder %v36, 0.0
    %v138 = vand.u32 %v36, 2147483648
    %v139 = vsel %vm137, %v138, %v136
    %v140 = vadd.f32 %v22, 1e-10
    %v141 = vrcp.pop %v140
    %v142 = vmul.f32 %v139, %v141
    %v143 = vmul.f32 %v23, %v142
    %v144 = vsub.f32 %v29, %v143
    %146 = vset.pattern.permute.xlu0 0
    %147 = vperm.xlu0 %146, %v142
    %v148 = vpop.permute.xlu0 %147
    %v150 = vmul.f32 %v130, %v148
    %152 = vset.pattern.permute.xlu0 0
    %153 = vperm.xlu0 %152, %v144
    %v154 = vpop.permute.xlu0 %153
    %v156 = vadd.f32 %v150, %v154
    %vm157 = vcmask 64512
    %158 = vst.msk [vmem:[#allocation2] sm:$0xff] %vm157, %v156
    // Predicated region
    $region22: #{tpu_custom_call.1} parent=1 // pred_check
      _
    $region23: #{tpu_custom_call.1} parent=1 // pred_check_branch
      %160 = sbr.rel (0) target = $region25
    $region24: #{tpu_custom_call.1} parent=1 // pred_region
      %s162 = ssub.s32 128, 128
      %163 = vsyncadd [#allocation3], %s162
      %s165 = sshll.u32 [#allocation2], 4
      %s166 = int_to_ptr.vmem [resolvable:$true] %s165
      %168 = dma.vmem_to_hbm [thread:$0]  %s166, 128, %s5, [#allocation3]
    $region25: #{tpu_custom_call.1} parent=1 // pred_fallthru
      _
    // Predicated region
    $region26: #{tpu_custom_call.1} parent=1 // pred_check
      _
    $region27: #{tpu_custom_call.1} parent=1 // pred_check_branch
      %170 = sbr.rel (0) target = $region29
    $region28: #{tpu_custom_call.1} parent=1 // pred_region
      %171 = dma.done [#allocation3], 128
    $region29: #{tpu_custom_call.1} parent=1 // pred_fallthru
      _
    %172 = vsyncpa [#allocation3], 1

</llo_original>
